<compile_context>
chip_gen: v7x
topology: tpu7x:2x2x1
jax: 0.10.0
libtpu: 0.0.40
codegen_flags: <defaults>
</compile_context>

<pallas_src>
import math
import functools

import jax
import jax.numpy as jnp
from jax import lax
from jax.experimental import pallas as pl
from jax.experimental.pallas import tpu as pltpu


# ----------------------------------------------------------------------------
# Fused attention kernel: x -> O( softmax(Q K^T / sqrt(Dh)) V )
# ----------------------------------------------------------------------------
def _fused_attention_kernel(x_ref, wqkv_ref, wo_ref, o_ref, *,
                            num_heads, head_dim, scale):
    dt = x_ref.dtype
    T = x_ref.shape[1]
    HDh = num_heads * head_dim
    D_out = o_ref.shape[2]

    x = x_ref[0]                                   # (T, D), input dtype

    # --- fused QKV projection: one MXU matmul, f32 accumulation -------------
    qkv = lax.dot_general(
        x, wqkv_ref[...], (((1,), (0,)), ((), ())),
        preferred_element_type=jnp.float32)        # (T, 3*H*Dh) f32

    q = qkv[:, 0 * HDh:1 * HDh] * scale            # fold softmax scale into q
    k = qkv[:, 1 * HDh:2 * HDh]
    v = qkv[:, 2 * HDh:3 * HDh]

    wo = wo_ref[...]                               # (H*Dh, D)

    # --- per-head attention + accumulated output projection ------------------
    acc = jnp.zeros((T, D_out), jnp.float32)
    for h in range(num_heads):                     # static unroll (H is small)
        sl = slice(h * head_dim, (h + 1) * head_dim)
        qh = q[:, sl].astype(dt)                   # (T, Dh)
        kh = k[:, sl].astype(dt)                   # (T, Dh)
        vh = v[:, sl].astype(dt)                   # (T, Dh)

        # scores: NT contraction, no explicit transpose of K
        s = lax.dot_general(qh, kh, (((1,), (1,)), ((), ())),
                            preferred_element_type=jnp.float32)   # (T, T)

        m = jnp.max(s, axis=-1, keepdims=True)
        p = jnp.exp(s - m)
        l = jnp.sum(p, axis=-1, keepdims=True)

        oh = lax.dot_general(p.astype(dt), vh, (((1,), (0,)), ((), ())),
                             preferred_element_type=jnp.float32)  # (T, Dh)
        oh = oh * pl.reciprocal(l, approx=True)    # EUP slot, not VALU divide

        # output projection contribution of this head:
        #   o_cat @ wo == sum_h oh @ wo[h*Dh:(h+1)*Dh, :]
        wo_h = wo[h * head_dim:(h + 1) * head_dim, :].astype(dt)  # sublane slice
        acc = acc + lax.dot_general(oh.astype(dt), wo_h,
                                    (((1,), (0,)), ((), ())),
                                    preferred_element_type=jnp.float32)

    o_ref[0] = acc.astype(o_ref.dtype)


# ----------------------------------------------------------------------------
# Module wrapper
# ----------------------------------------------------------------------------
def attention_forward(x, params, num_heads):
    """Mirrors Attention.forward(query=x) with key=value=query, no mask,
    no cache, no positional embedding.  Returns {'x': out}.

    Weights are stored as (in_features, out_features): y = x @ W."""
    wq, wk, wv, wo = params["Q"], params["K"], params["V"], params["O"]
    B, T, D = x.shape
    HDh = wq.shape[1]
    head_dim = HDh // num_heads

    # One-time, weights-only fusion of the three projection matrices.
    wqkv = jnp.concatenate([wq, wk, wv], axis=1)   # (D, 3*H*Dh)

    kern = functools.partial(
        _fused_attention_kernel,
        num_heads=num_heads,
        head_dim=head_dim,
        scale=1.0 / math.sqrt(head_dim),
    )

    out = pl.pallas_call(
        kern,
        out_shape=jax.ShapeDtypeStruct((B, T, wo.shape[1]), x.dtype),
        grid=(B,),
        in_specs=[
            pl.BlockSpec((1, T, D), lambda b: (b, 0, 0)),          # activations
            pl.BlockSpec((D, 3 * HDh), lambda b: (0, 0)),          # fused QKV W
            pl.BlockSpec((HDh, wo.shape[1]), lambda b: (0, 0)),    # output W
        ],
        out_specs=pl.BlockSpec((1, T, wo.shape[1]), lambda b: (b, 0, 0)),
        compiler_params=pltpu.CompilerParams(
            dimension_semantics=("parallel",)),     # shard batch across TCs (v7x)
    )(x, wqkv, wo)

    return {"x": out}


# ----------------------------------------------------------------------------
# Pure-JAX reference (for correctness check)
# ----------------------------------------------------------------------------
def _reference_forward(x, params, num_heads):
    wq, wk, wv, wo = params["Q"], params["K"], params["V"], params["O"]
    B, T, D = x.shape
    Dh = wq.shape[1] // num_heads
    q = (x @ wq).reshape(B, T, num_heads, Dh).transpose(0, 2, 1, 3)
    k = (x @ wk).reshape(B, T, num_heads, Dh).transpose(0, 2, 1, 3)
    v = (x @ wv).reshape(B, T, num_heads, Dh).transpose(0, 2, 1, 3)
    s = jnp.einsum("bhqd,bhkd->bhqk", q, k) / math.sqrt(Dh)
    p = jax.nn.softmax(s, axis=-1)
    o = jnp.einsum("bhqk,bhkd->bhqd", p, v)
    o = o.transpose(0, 2, 1, 3).reshape(B, T, num_heads * Dh)
    return o @ wo


# ----------------------------------------------------------------------------
if __name__ == "__main__":
    # Small shapes consistent with the module: embed_dim=32, num_heads=4,
    # head_dim=8, batch=2, seq=8.
    B, T, D = 2, 8, 32
    H = 4
    Dh = D // H

    key = jax.random.PRNGKey(0)
    kx, kq, kk, kv, ko = jax.random.split(key, 5)

    scale_in = 1.0 / math.sqrt(D)
    scale_hd = 1.0 / math.sqrt(H * Dh)
    params = {
        "Q": jax.random.uniform(kq, (D, H * Dh), jnp.float32, -scale_in, scale_in),
        "K": jax.random.uniform(kk, (D, H * Dh), jnp.float32, -scale_in, scale_in),
        "V": jax.random.uniform(kv, (D, H * Dh), jnp.float32, -scale_in, scale_in),
        "O": jax.random.uniform(ko, (H * Dh, D), jnp.float32, -scale_hd, scale_hd),
    }

    x = jax.random.normal(kx, (B, T, D), jnp.float32)

    out = attention_forward(x, params, num_heads=H)
    out_x = jax.block_until_ready(out["x"])

    ref = _reference_forward(x, params, num_heads=H)
    assert out_x.shape == (B, T, D)
    # Tolerance accounts for the EUP approximate reciprocal in the softmax.
    assert jnp.allclose(out_x, ref, atol=2e-3, rtol=2e-3), "mismatch vs reference"

    # TODO(synk): flex_attention BlockMask, KV cache and rope (pos_emb) paths
    # are not exercised by this forward (query==key==value, mask=None).
    print("KERNEL_OK")
</pallas_src>

<mosaic_0001>
module attributes {stable_mosaic.version = 11 : i64} {
  func.func @_fused_attention_kernel(%arg0: i32, %arg1: memref<1x8x32xf32, #tpu.memory_space<vmem>>, %arg2: memref<32x96xf32, #tpu.memory_space<vmem>>, %arg3: memref<32x32xf32, #tpu.memory_space<vmem>>, %arg4: memref<1x8x32xf32, #tpu.memory_space<vmem>>) attributes {dimension_semantics = [#tpu.dimension_semantics<parallel>], iteration_bounds = array<i64: 2>, scalar_prefetch = 0 : i64, scratch_operands = 0 : i64, tpu.core_type = #tpu.core_type<tc>, window_params = [{transform_indices = @transform_0, window_bounds = array<i64: 1, 8, 32>}, {pipeline_mode = #tpu.pipeline_mode<synchronous>, transform_indices = @transform_1, window_bounds = array<i64: 32, 96>}, {pipeline_mode = #tpu.pipeline_mode<synchronous>, transform_indices = @transform_2, window_bounds = array<i64: 32, 32>}, {transform_indices = @transform_3, window_bounds = array<i64: 1, 8, 32>}]} {
    %c0 = arith.constant 0 : index
    %c0_0 = arith.constant 0 : index
    %c0_1 = arith.constant 0 : index
    %0 = vector.load %arg1[%c0, %c0_0, %c0_1] : memref<1x8x32xf32, #tpu.memory_space<vmem>>, vector<1x8x32xf32>
    %1 = vector.shape_cast %0 : vector<1x8x32xf32> to vector<8x32xf32>
    %c0_2 = arith.constant 0 : index
    %c0_3 = arith.constant 0 : index
    %2 = vector.load %arg2[%c0_2, %c0_3] : memref<32x96xf32, #tpu.memory_space<vmem>>, vector<32x96xf32>
    %cst = arith.constant dense<0.000000e+00> : vector<8x96xf32>
    %3 = tpu.matmul %1, %2, %cst {dimension_numbers = #tpu.dot_dimension_numbers<[1], [0], [0], [1], [0, 0, 1, 1], [], []>} : vector<8x32xf32>, vector<32x96xf32>, vector<8x96xf32> -> vector<8x96xf32>
    %4 = vector.extract_strided_slice %3 {offsets = [0, 0], sizes = [8, 32], strides = [1, 1]} : vector<8x96xf32> to vector<8x32xf32>
    %cst_4 = arith.constant 0.353553385 : f32
    %5 = vector.broadcast %cst_4 : f32 to vector<8x32xf32>
    %6 = arith.mulf %4, %5 : vector<8x32xf32>
    %7 = vector.extract_strided_slice %3 {offsets = [0, 32], sizes = [8, 32], strides = [1, 1]} : vector<8x96xf32> to vector<8x32xf32>
    %8 = vector.extract_strided_slice %3 {offsets = [0, 64], sizes = [8, 32], strides = [1, 1]} : vector<8x96xf32> to vector<8x32xf32>
    %c0_5 = arith.constant 0 : index
    %c0_6 = arith.constant 0 : index
    %9 = vector.load %arg3[%c0_5, %c0_6] : memref<32x32xf32, #tpu.memory_space<vmem>>, vector<32x32xf32>
    %cst_7 = arith.constant 0.000000e+00 : f32
    %10 = vector.broadcast %cst_7 : f32 to vector<8x32xf32>
    %11 = vector.extract_strided_slice %6 {offsets = [0, 0], sizes = [8, 8], strides = [1, 1]} : vector<8x32xf32> to vector<8x8xf32>
    %12 = vector.extract_strided_slice %7 {offsets = [0, 0], sizes = [8, 8], strides = [1, 1]} : vector<8x32xf32> to vector<8x8xf32>
    %13 = vector.extract_strided_slice %8 {offsets = [0, 0], sizes = [8, 8], strides = [1, 1]} : vector<8x32xf32> to vector<8x8xf32>
    %cst_8 = arith.constant dense<0.000000e+00> : vector<8x8xf32>
    %14 = tpu.matmul %11, %12, %cst_8 {dimension_numbers = #tpu.dot_dimension_numbers<[1], [1], [0], [0], [0, 0, 1, 0], [], []>} : vector<8x8xf32>, vector<8x8xf32>, vector<8x8xf32> -> vector<8x8xf32>
    %cst_9 = arith.constant dense<0xFF800000> : vector<8xf32>
    %15 = vector.multi_reduction <maximumf>, %14, %cst_9 [1] : vector<8x8xf32> to vector<8xf32>
    %16 = vector.shape_cast %15 : vector<8xf32> to vector<8x1xf32>
    %17 = vector.broadcast %16 : vector<8x1xf32> to vector<8x8xf32>
    %18 = arith.subf %14, %17 : vector<8x8xf32>
    %19 = math.exp %18 : vector<8x8xf32>
    %cst_10 = arith.constant dense<0.000000e+00> : vector<8xf32>
    %20 = vector.multi_reduction <add>, %19, %cst_10 [1] : vector<8x8xf32> to vector<8xf32>
    %21 = vector.shape_cast %20 : vector<8xf32> to vector<8x1xf32>
    %cst_11 = arith.constant dense<0.000000e+00> : vector<8x8xf32>
    %22 = tpu.matmul %19, %13, %cst_11 {dimension_numbers = #tpu.dot_dimension_numbers<[1], [0], [0], [1], [0, 0, 1, 1], [], []>} : vector<8x8xf32>, vector<8x8xf32>, vector<8x8xf32> -> vector<8x8xf32>
    %23 = tpu.reciprocal %21 {approx = true} : vector<8x1xf32> -> vector<8x1xf32>
    %24 = vector.broadcast %23 : vector<8x1xf32> to vector<8x8xf32>
    %25 = arith.mulf %22, %24 : vector<8x8xf32>
    %26 = vector.extract_strided_slice %9 {offsets = [0, 0], sizes = [8, 32], strides = [1, 1]} : vector<32x32xf32> to vector<8x32xf32>
    %cst_12 = arith.constant dense<0.000000e+00> : vector<8x32xf32>
    %27 = tpu.matmul %25, %26, %cst_12 {dimension_numbers = #tpu.dot_dimension_numbers<[1], [0], [0], [1], [0, 0, 1, 1], [], []>} : vector<8x8xf32>, vector<8x32xf32>, vector<8x32xf32> -> vector<8x32xf32>
    %28 = arith.addf %10, %27 : vector<8x32xf32>
    %29 = vector.extract_strided_slice %6 {offsets = [0, 8], sizes = [8, 8], strides = [1, 1]} : vector<8x32xf32> to vector<8x8xf32>
    %30 = vector.extract_strided_slice %7 {offsets = [0, 8], sizes = [8, 8], strides = [1, 1]} : vector<8x32xf32> to vector<8x8xf32>
    %31 = vector.extract_strided_slice %8 {offsets = [0, 8], sizes = [8, 8], strides = [1, 1]} : vector<8x32xf32> to vector<8x8xf32>
    %cst_13 = arith.constant dense<0.000000e+00> : vector<8x8xf32>
    %32 = tpu.matmul %29, %30, %cst_13 {dimension_numbers = #tpu.dot_dimension_numbers<[1], [1], [0], [0], [0, 0, 1, 0], [], []>} : vector<8x8xf32>, vector<8x8xf32>, vector<8x8xf32> -> vector<8x8xf32>
    %cst_14 = arith.constant dense<0xFF800000> : vector<8xf32>
    %33 = vector.multi_reduction <maximumf>, %32, %cst_14 [1] : vector<8x8xf32> to vector<8xf32>
    %34 = vector.shape_cast %33 : vector<8xf32> to vector<8x1xf32>
    %35 = vector.broadcast %34 : vector<8x1xf32> to vector<8x8xf32>
    %36 = arith.subf %32, %35 : vector<8x8xf32>
    %37 = math.exp %36 : vector<8x8xf32>
    %cst_15 = arith.constant dense<0.000000e+00> : vector<8xf32>
    %38 = vector.multi_reduction <add>, %37, %cst_15 [1] : vector<8x8xf32> to vector<8xf32>
    %39 = vector.shape_cast %38 : vector<8xf32> to vector<8x1xf32>
    %cst_16 = arith.constant dense<0.000000e+00> : vector<8x8xf32>
    %40 = tpu.matmul %37, %31, %cst_16 {dimension_numbers = #tpu.dot_dimension_numbers<[1], [0], [0], [1], [0, 0, 1, 1], [], []>} : vector<8x8xf32>, vector<8x8xf32>, vector<8x8xf32> -> vector<8x8xf32>
    %41 = tpu.reciprocal %39 {approx = true} : vector<8x1xf32> -> vector<8x1xf32>
    %42 = vector.broadcast %41 : vector<8x1xf32> to vector<8x8xf32>
    %43 = arith.mulf %40, %42 : vector<8x8xf32>
    %44 = vector.extract_strided_slice %9 {offsets = [8, 0], sizes = [8, 32], strides = [1, 1]} : vector<32x32xf32> to vector<8x32xf32>
    %cst_17 = arith.constant dense<0.000000e+00> : vector<8x32xf32>
    %45 = tpu.matmul %43, %44, %cst_17 {dimension_numbers = #tpu.dot_dimension_numbers<[1], [0], [0], [1], [0, 0, 1, 1], [], []>} : vector<8x8xf32>, vector<8x32xf32>, vector<8x32xf32> -> vector<8x32xf32>
    %46 = arith.addf %28, %45 : vector<8x32xf32>
    %47 = vector.extract_strided_slice %6 {offsets = [0, 16], sizes = [8, 8], strides = [1, 1]} : vector<8x32xf32> to vector<8x8xf32>
    %48 = vector.extract_strided_slice %7 {offsets = [0, 16], sizes = [8, 8], strides = [1, 1]} : vector<8x32xf32> to vector<8x8xf32>
    %49 = vector.extract_strided_slice %8 {offsets = [0, 16], sizes = [8, 8], strides = [1, 1]} : vector<8x32xf32> to vector<8x8xf32>
    %cst_18 = arith.constant dense<0.000000e+00> : vector<8x8xf32>
    %50 = tpu.matmul %47, %48, %cst_18 {dimension_numbers = #tpu.dot_dimension_numbers<[1], [1], [0], [0], [0, 0, 1, 0], [], []>} : vector<8x8xf32>, vector<8x8xf32>, vector<8x8xf32> -> vector<8x8xf32>
    %cst_19 = arith.constant dense<0xFF800000> : vector<8xf32>
    %51 = vector.multi_reduction <maximumf>, %50, %cst_19 [1] : vector<8x8xf32> to vector<8xf32>
    %52 = vector.shape_cast %51 : vector<8xf32> to vector<8x1xf32>
    %53 = vector.broadcast %52 : vector<8x1xf32> to vector<8x8xf32>
    %54 = arith.subf %50, %53 : vector<8x8xf32>
    %55 = math.exp %54 : vector<8x8xf32>
    %cst_20 = arith.constant dense<0.000000e+00> : vector<8xf32>
    %56 = vector.multi_reduction <add>, %55, %cst_20 [1] : vector<8x8xf32> to vector<8xf32>
    %57 = vector.shape_cast %56 : vector<8xf32> to vector<8x1xf32>
    %cst_21 = arith.constant dense<0.000000e+00> : vector<8x8xf32>
    %58 = tpu.matmul %55, %49, %cst_21 {dimension_numbers = #tpu.dot_dimension_numbers<[1], [0], [0], [1], [0, 0, 1, 1], [], []>} : vector<8x8xf32>, vector<8x8xf32>, vector<8x8xf32> -> vector<8x8xf32>
    %59 = tpu.reciprocal %57 {approx = true} : vector<8x1xf32> -> vector<8x1xf32>
    %60 = vector.broadcast %59 : vector<8x1xf32> to vector<8x8xf32>
    %61 = arith.mulf %58, %60 : vector<8x8xf32>
    %62 = vector.extract_strided_slice %9 {offsets = [16, 0], sizes = [8, 32], strides = [1, 1]} : vector<32x32xf32> to vector<8x32xf32>
    %cst_22 = arith.constant dense<0.000000e+00> : vector<8x32xf32>
    %63 = tpu.matmul %61, %62, %cst_22 {dimension_numbers = #tpu.dot_dimension_numbers<[1], [0], [0], [1], [0, 0, 1, 1], [], []>} : vector<8x8xf32>, vector<8x32xf32>, vector<8x32xf32> -> vector<8x32xf32>
    %64 = arith.addf %46, %63 : vector<8x32xf32>
    %65 = vector.extract_strided_slice %6 {offsets = [0, 24], sizes = [8, 8], strides = [1, 1]} : vector<8x32xf32> to vector<8x8xf32>
    %66 = vector.extract_strided_slice %7 {offsets = [0, 24], sizes = [8, 8], strides = [1, 1]} : vector<8x32xf32> to vector<8x8xf32>
    %67 = vector.extract_strided_slice %8 {offsets = [0, 24], sizes = [8, 8], strides = [1, 1]} : vector<8x32xf32> to vector<8x8xf32>
    %cst_23 = arith.constant dense<0.000000e+00> : vector<8x8xf32>
    %68 = tpu.matmul %65, %66, %cst_23 {dimension_numbers = #tpu.dot_dimension_numbers<[1], [1], [0], [0], [0, 0, 1, 0], [], []>} : vector<8x8xf32>, vector<8x8xf32>, vector<8x8xf32> -> vector<8x8xf32>
    %cst_24 = arith.constant dense<0xFF800000> : vector<8xf32>
    %69 = vector.multi_reduction <maximumf>, %68, %cst_24 [1] : vector<8x8xf32> to vector<8xf32>
    %70 = vector.shape_cast %69 : vector<8xf32> to vector<8x1xf32>
    %71 = vector.broadcast %70 : vector<8x1xf32> to vector<8x8xf32>
    %72 = arith.subf %68, %71 : vector<8x8xf32>
    %73 = math.exp %72 : vector<8x8xf32>
    %cst_25 = arith.constant dense<0.000000e+00> : vector<8xf32>
    %74 = vector.multi_reduction <add>, %73, %cst_25 [1] : vector<8x8xf32> to vector<8xf32>
    %75 = vector.shape_cast %74 : vector<8xf32> to vector<8x1xf32>
    %cst_26 = arith.constant dense<0.000000e+00> : vector<8x8xf32>
    %76 = tpu.matmul %73, %67, %cst_26 {dimension_numbers = #tpu.dot_dimension_numbers<[1], [0], [0], [1], [0, 0, 1, 1], [], []>} : vector<8x8xf32>, vector<8x8xf32>, vector<8x8xf32> -> vector<8x8xf32>
    %77 = tpu.reciprocal %75 {approx = true} : vector<8x1xf32> -> vector<8x1xf32>
    %78 = vector.broadcast %77 : vector<8x1xf32> to vector<8x8xf32>
    %79 = arith.mulf %76, %78 : vector<8x8xf32>
    %80 = vector.extract_strided_slice %9 {offsets = [24, 0], sizes = [8, 32], strides = [1, 1]} : vector<32x32xf32> to vector<8x32xf32>
    %cst_27 = arith.constant dense<0.000000e+00> : vector<8x32xf32>
    %81 = tpu.matmul %79, %80, %cst_27 {dimension_numbers = #tpu.dot_dimension_numbers<[1], [0], [0], [1], [0, 0, 1, 1], [], []>} : vector<8x8xf32>, vector<8x32xf32>, vector<8x32xf32> -> vector<8x32xf32>
    %82 = arith.addf %64, %81 : vector<8x32xf32>
    %c0_28 = arith.constant 0 : index
    %c0_29 = arith.constant 0 : index
    %c0_30 = arith.constant 0 : index
    %83 = vector.load %arg4[%c0_28, %c0_29, %c0_30] : memref<1x8x32xf32, #tpu.memory_space<vmem>>, vector<1x8x32xf32>
    %84 = vector.shape_cast %83 : vector<1x8x32xf32> to vector<8x32xf32>
    %85 = vector.shape_cast %82 : vector<8x32xf32> to vector<1x8x32xf32>
    tpu.vector_store %arg4[%c0_28, %c0_29, %c0_30], %85 {strides = array<i32>} : memref<1x8x32xf32, #tpu.memory_space<vmem>>, vector<1x8x32xf32>,
    return
  }
  func.func @transform_0(%arg0: i32) -> (i32, i32, i32) {
    %c0_i32 = arith.constant 0 : i32
    %c0_i32_0 = arith.constant 0 : i32
    %c0_i32_1 = arith.constant 0 : i32
    return %arg0, %c0_i32, %c0_i32_0 : i32, i32, i32
  }
  func.func @transform_1(%arg0: i32) -> (i32, i32) {
    %c0_i32 = arith.constant 0 : i32
    %c0_i32_0 = arith.constant 0 : i32
    %c0_i32_1 = arith.constant 0 : i32
    return %c0_i32, %c0_i32_0 : i32, i32
  }
  func.func @transform_2(%arg0: i32) -> (i32, i32) {
    %c0_i32 = arith.constant 0 : i32
    %c0_i32_0 = arith.constant 0 : i32
    %c0_i32_1 = arith.constant 0 : i32
    return %c0_i32, %c0_i32_0 : i32, i32
  }
  func.func @transform_3(%arg0: i32) -> (i32, i32, i32) {
    %c0_i32 = arith.constant 0 : i32
    %c0_i32_0 = arith.constant 0 : i32
    %c0_i32_1 = arith.constant 0 : i32
    return %arg0, %c0_i32, %c0_i32_0 : i32, i32, i32
  }
}

</mosaic_0001>

<llo_original>
// kernel: tpu_custom_call.1
$region0: #{tpu_custom_call.1}
  #allocation0 [shape = 'u32[]', space=smem, size = 0x4, offset = 0x4, fixed_abs, tag = 'smem constant byte address 0x4 - core index']
  #allocation1 [shape = 'u32[144,128]{1,0:T(1,128)}', space=vmem, size = 0x12000, scoped, tag = 'internal scratch']
  %s0 = inlined_call_operand.hbm [shape: f32[2,8,32], index: 0, kind: input, shape index: {}]
  %s1 = inlined_call_operand.hbm [shape: f32[32,96], index: 1, kind: input, shape index: {}]
  %s2 = inlined_call_operand.hbm [shape: f32[32,32], index: 2, kind: input, shape index: {}]
  %s3 = inlined_call_operand.hbm [shape: f32[2,8,32], index: 3, kind: output, shape index: {}]
  %s4 = sld [smem:[#allocation0]]
  $region57: #{tpu_custom_call.1} parent=0
    _
  %s6 = ssub.s32 1, %s4
  %s7 = scalar_select 0, %s6, %s4
  $region1: #{tpu_custom_call.1} parent=0
    #allocation2 [shape = 'u8[8192]{0}', space=vmem, size = 0x2000, scoped, tag = 'input window, operand 0']
    #allocation3 [shape = 's32[2]{0}', space=sflag, size = 0x8, scoped, tag = 'scoped memory for tpu_custom_call.1']
    #allocation4 [shape = 's32[2]{0}', space=sflag, size = 0x8, scoped, tag = 'scoped memory for tpu_custom_call.1']
    #allocation5 [shape = 'u8[16384]{0}', space=vmem, size = 0x4000, scoped, tag = 'input window, operand 1, single buffered']
    #allocation6 [shape = 's32[1]{0}', space=sflag, size = 0x4, scoped, tag = 'scoped memory for tpu_custom_call.1']
    #allocation7 [shape = 'u8[16384]{0}', space=vmem, size = 0x4000, scoped, tag = 'input window, operand 2, single buffered']
    #allocation8 [shape = 'u8[8192]{0}', space=vmem, size = 0x2000, scoped, tag = 'output window, operand 0']
    %8 = vsyncpa [#allocation3], 0
    %s9 = scalar_lea.sflag [#allocation3], 1
    %10 = vsyncpa %s9, 0
    %11 = vsyncpa [#allocation6], 0
    %12 = vsyncpa [#allocation4], 0
    %s13 = scalar_lea.sflag [#allocation4], 1
    %14 = vsyncpa %s13, 0
    loop: start=0, step=1, limit=4
    $region2: #{tpu_custom_call.1} parent=1 // loop_pre_header
      _
    $region3: #{tpu_custom_call.1} parent=1 // loop_header
      %s16 = sphi 0, %s20
      %p17 = scmp.ge.s32.totalorder %s16, 4
      %s26 = sphi 0, %s28
      %s29 = sphi 0, %s26
      %s30 = sphi 0, %s29
      %s46 = sphi 0, %s30
      %s50 = sphi 0, %s50
      %s52 = sphi 0, %s50
      %s53 = sphi 0, %s52
      %s67 = sphi 0, %s53
      %s71 = sphi 0, %s71
      %s73 = sphi 0, %s71
      %s74 = sphi 0, %s73
      %s88 = sphi 0, %s74
      %s94 = sphi 0, %s96
      %s97 = sphi 0, %s94
      %s98 = sphi 0, %s97
      %s114 = sphi 0, %s98
    $region4: #{tpu_custom_call.1} parent=1 // loop_header_branch
      %19 = sbr.rel (%p17) target = $region8
    $region5: #{tpu_custom_call.1} parent=1 // loop_body
      %s21 = ssub.s32 %s16, 1
      %s22 = ssub.s32 %s16, 2
      %s23 = sadd.s32 %s16, 1
      %s24 = ssub.s32 %s16, %s23
      %p25 = scmp.eq.s32.totalorder %s24, 0
      %s27 = sadd.s32 %s26, 1
      %s28 = scalar_select %p25, %s26, %s27
      %p31 = pneg %p25
      %p32 = scmp.eq.s32.totalorder %s16, 1
      %p33 = por %p31, %p32
      %p34 = scmp.ne.s32.totalorder %s26, %s29
      %p35 = scmp.eq.s32.totalorder %s16, 0
      %p36 = por %p34, %p35
      %p37 = scmp.ne.s32.totalorder %s26, %s29
      %p38 = scmp.eq.s32.totalorder %s21, 1
      %p39 = por %p37, %p38
      %p40 = scmp.ne.s32.totalorder %s29, %s30
      %p41 = scmp.eq.s32.totalorder %s21, 0
      %p42 = por %p40, %p41
      %p43 = scmp.ne.s32.totalorder %s29, %s30
      %p44 = scmp.eq.s32.totalorder %s22, 1
      %p45 = por %p43, %p44
      %p47 = scmp.ne.s32.totalorder %s30, %s46
      %p48 = scmp.eq.s32.totalorder %s22, 0
      %p49 = por %p47, %p48
      %s51 = sadd.s32 %s50, 1
      %p54 = scmp.eq.s32.totalorder %s16, 1
      %p55 = scmp.ne.s32.totalorder %s50, %s52
      %p56 = scmp.eq.s32.totalorder %s16, 0
      %p57 = por %p55, %p56
      %p58 = scmp.ne.s32.totalorder %s50, %s52
      %p59 = scmp.eq.s32.totalorder %s21, 1
      %p60 = por %p58, %p59
      %p61 = scmp.ne.s32.totalorder %s52, %s53
      %p62 = scmp.eq.s32.totalorder %s21, 0
      %p63 = por %p61, %p62
      %p64 = scmp.ne.s32.totalorder %s52, %s53
      %p65 = scmp.eq.s32.totalorder %s22, 1
      %p66 = por %p64, %p65
      %p68 = scmp.ne.s32.totalorder %s53, %s67
      %p69 = scmp.eq.s32.totalorder %s22, 0
      %p70 = por %p68, %p69
      %s72 = sadd.s32 %s71, 1
      %p75 = scmp.eq.s32.totalorder %s16, 1
      %p76 = scmp.ne.s32.totalorder %s71, %s73
      %p77 = scmp.eq.s32.totalorder %s16, 0
      %p78 = por %p76, %p77
      %p79 = scmp.ne.s32.totalorder %s71, %s73
      %p80 = scmp.eq.s32.totalorder %s21, 1
      %p81 = por %p79, %p80
      %p82 = scmp.ne.s32.totalorder %s73, %s74
      %p83 = scmp.eq.s32.totalorder %s21, 0
      %p84 = por %p82, %p83
      %p85 = scmp.ne.s32.totalorder %s73, %s74
      %p86 = scmp.eq.s32.totalorder %s22, 1
      %p87 = por %p85, %p86
      %p89 = scmp.ne.s32.totalorder %s74, %s88
      %p90 = scmp.eq.s32.totalorder %s22, 0
      %p91 = por %p89, %p90
      %s92 = ssub.s32 %s16, %s23
      %p93 = scmp.eq.s32.totalorder %s92, 0
      %s95 = sadd.s32 %s94, 1
      %s96 = scalar_select %p93, %s94, %s95
      %p99 = pneg %p93
      %p100 = scmp.eq.s32.totalorder %s16, 1
      %p101 = por %p99, %p100
      %p102 = scmp.ne.s32.totalorder %s94, %s97
      %p103 = scmp.eq.s32.totalorder %s16, 0
      %p104 = por %p102, %p103
      %p105 = scmp.ne.s32.totalorder %s94, %s97
      %p106 = scmp.eq.s32.totalorder %s21, 1
      %p107 = por %p105, %p106
      %p108 = scmp.ne.s32.totalorder %s97, %s98
      %p109 = scmp.eq.s32.totalorder %s21, 0
      %p110 = por %p108, %p109
      %p111 = scmp.ne.s32.totalorder %s97, %s98
      %p112 = scmp.eq.s32.totalorder %s22, 1
      %p113 = por %p111, %p112
      %p115 = scmp.ne.s32.totalorder %s98, %s114
      %p116 = scmp.eq.s32.totalorder %s22, 0
      %p117 = por %p115, %p116
      %p118 = scmp.le.s32.totalorder 1, %s16
      %p119 = scmp.lt.s32.totalorder %s16, 3
      %p120 = pnand %p118, %p119
      %p121 = pneg %p120
      // Predicated region
      $region9: #{tpu_custom_call.1} parent=5 // pred_check
        _
      $region10: #{tpu_custom_call.1} parent=5 // pred_check_branch
        %123 = sbr.rel (%p120) target = $region12
      $region11: #{tpu_custom_call.1} parent=5 // pred_region
        %s124 = ssub.s32 %s16, 1
        // Predicated region
        $region13: #{tpu_custom_call.1} parent=11 // pred_check
          %p125 = pneg %p63
        $region14: #{tpu_custom_call.1} parent=11 // pred_check_branch
          %127 = sbr.rel (%p125) target = $region16
        $region15: #{tpu_custom_call.1} parent=11 // pred_region
          %s129 = ssub.s32 512, 512
          %130 = vsyncadd [#allocation6], %s129
          %s131 = sshll.u32 [#allocation5], 4
          %s132 = int_to_ptr.vmem [resolvable:$true] %s131
          %137 = dma.hbm_to_vmem [thread:$0]  %s1, 512, %s132, [#allocation6], 128, 128, 8
        $region16: #{tpu_custom_call.1} parent=11 // pred_fallthru
          _
        // Predicated region
        $region17: #{tpu_custom_call.1} parent=11 // pred_check
          %p138 = pneg %p84
        $region18: #{tpu_custom_call.1} parent=11 // pred_check_branch
          %140 = sbr.rel (%p138) target = $region20
        $region19: #{tpu_custom_call.1} parent=11 // pred_region
          %s142 = ssub.s32 512, 512
          %143 = vsyncadd [#allocation6], %s142
          %s144 = sshll.u32 [#allocation7], 4
          %s145 = int_to_ptr.vmem [resolvable:$true] %s144
          %150 = dma.hbm_to_vmem [thread:$0]  %s2, 512, %s145, [#allocation6], 128, 128, 8
        $region20: #{tpu_custom_call.1} parent=11 // pred_fallthru
          _
      $region12: #{tpu_custom_call.1} parent=5 // pred_fallthru
        _
      %p151 = scmp.lt.s32.totalorder %s16, 2
      // Predicated region
      $region21: #{tpu_custom_call.1} parent=5 // pred_check
        %p152 = pneg %p151
      $region22: #{tpu_custom_call.1} parent=5 // pred_check_branch
        %154 = sbr.rel (%p152) target = $region24
      $region23: #{tpu_custom_call.1} parent=5 // pred_region
        // Predicated region
        $region25: #{tpu_custom_call.1} parent=23 // pred_check
          %p155 = pneg %p36
        $region26: #{tpu_custom_call.1} parent=23 // pred_check_branch
          %157 = sbr.rel (%p155) target = $region28
        $region27: #{tpu_custom_call.1} parent=23 // pred_region
          %s158 = sand.u32 %s26, 1
          %s159 = scalar_lea.sflag [#allocation3], %s158
          %s160 = sand.u32 %s26, 1
          %s161 = smul.addr %s160, 8
          %s162 = scalar_lea.vmem [#allocation2], %s161
          %s164 = ssub.s32 128, 128
          %165 = vsyncadd %s159, %s164
          %s166 = smul.addr %s16, 128
          %s167 = scalar_lea.hbm %s0, %s166
          %s169 = sshll.u32 %s162, 4
          %s170 = int_to_ptr.vmem [resolvable:$true] %s169
          %172 = dma.hbm_to_vmem [thread:$0]  %s167, 128, %s170, %s159
        $region28: #{tpu_custom_call.1} parent=23 // pred_fallthru
          _
      $region24: #{tpu_custom_call.1} parent=5 // pred_fallthru
        _
      %p173 = scmp.le.s32.totalorder 1, %s16
      %p174 = scmp.lt.s32.totalorder %s16, 3
      %p175 = pnand %p173, %p174
      %p176 = pneg %p175
      // Predicated region
      $region29: #{tpu_custom_call.1} parent=5 // pred_check
        _
      $region30: #{tpu_custom_call.1} parent=5 // pred_check_branch
        %178 = sbr.rel (%p175) target = $region32
      $region31: #{tpu_custom_call.1} parent=5 // pred_region
        %s179 = ssub.s32 %s16, 1
        %s180 = sand.u32 %s29, 1
        %s181 = scalar_lea.sflag [#allocation3], %s180
        %s182 = sand.u32 %s29, 1
        %s183 = smul.addr %s182, 8
        %s184 = scalar_lea.vmem [#allocation2], %s183
        // Predicated region
        $region33: #{tpu_custom_call.1} parent=31 // pred_check
          %p185 = pneg %p42
        $region34: #{tpu_custom_call.1} parent=31 // pred_check_branch
          %187 = sbr.rel (%p185) target = $region36
        $region35: #{tpu_custom_call.1} parent=31 // pred_region
          %188 = dma.done %s181, 128
        $region36: #{tpu_custom_call.1} parent=31 // pred_fallthru
          _
        // Predicated region
        $region37: #{tpu_custom_call.1} parent=31 // pred_check
          %p189 = pneg %p63
        $region38: #{tpu_custom_call.1} parent=31 // pred_check_branch
          %191 = sbr.rel (%p189) target = $region40
        $region39: #{tpu_custom_call.1} parent=31 // pred_region
          %192 = dma.done [#allocation6], 512
        $region40: #{tpu_custom_call.1} parent=31 // pred_fallthru
          _
        // Predicated region
        $region41: #{tpu_custom_call.1} parent=31 // pred_check
          %p193 = pneg %p84
        $region42: #{tpu_custom_call.1} parent=31 // pred_check_branch
          %195 = sbr.rel (%p193) target = $region44
        $region43: #{tpu_custom_call.1} parent=31 // pred_region
          %196 = dma.done [#allocation6], 512
        $region44: #{tpu_custom_call.1} parent=31 // pred_fallthru
          _
        %s197 = sand.u32 %s29, 1
        %s198 = scalar_lea.sflag [#allocation3], %s197
        %s199 = sand.u32 %s29, 1
        %s200 = smul.addr %s199, 8
        %s201 = scalar_lea.vmem [#allocation2], %s200
        %p202 = pneg %p42
        %p203 = pneg %p39
        %p204 = pneg %p63
        %p205 = pneg %p60
        %p206 = pneg %p84
        %p207 = pneg %p81
        %p208 = pneg %p110
        %p209 = pneg %p107
        %s210 = sand.u32 %s97, 1
        %s211 = scalar_lea.sflag [#allocation4], %s210
        %s212 = sand.u32 %s97, 1
        %s213 = smul.addr %s212, 8
        %s214 = scalar_lea.vmem [#allocation8], %s213
        %v215 = vld [vmem:[%s184] sm:$0xff]
        %v216 = vld [vmem:[#allocation5] sm:$0xff]
        %v217 = vld [vmem:[#allocation5 + $0x8] sm:$0xff]
        %v218 = vld [vmem:[#allocation5 + $0x10] sm:$0xff]
        %v219 = vld [vmem:[#allocation5 + $0x18] sm:$0xff]
        %vm220 = vcmask 261120
        %v222 = vsel %vm220, %v215, 0
        %224 = vmatprep.subr.mxu0 0.0
        %225 = vmatpush1.msra.mxu0 %v216
        %226 = vmatprep.subr.mxu0 0.0
        %227 = vmatpush1.msra.mxu0 %v217
        %228 = vmatprep.subr.mxu0 0.0
        %229 = vmatpush1.msra.mxu0 %v218
        %230 = vmatprep.subr.mxu0 0.0
        %231 = vmatpush1.msra.mxu0 %v219
        %232 = vmatprep.subr.mxu0 0.0
        %233 = vmatpush1.msra.mxu0 0.0
        %234 = vmatprep.subr.mxu0 0.0
        %235 = vmatpush1.msra.mxu0 0.0
        %236 = vmatprep.subr.mxu0 0.0
        %237 = vmatpush1.msra.mxu0 0.0
        %238 = vmatprep.subr.mxu0 0.0
        %239 = vmatpush1.msra.mxu0 0.0
        %240 = vmatprep.subr.mxu0 0.0
        %241 = vmatpush1.msra.mxu0 0.0
        %242 = vmatprep.subr.mxu0 0.0
        %243 = vmatpush1.msra.mxu0 0.0
        %244 = vmatprep.subr.mxu0 0.0
        %245 = vmatpush1.msra.mxu0 0.0
        %246 = vmatprep.subr.mxu0 0.0
        %247 = vmatpush1.msra.mxu0 0.0
        %248 = vmatprep.subr.mxu0 0.0
        %249 = vmatpush1.msra.mxu0 0.0
        %250 = vmatprep.subr.mxu0 0.0
        %251 = vmatpush1.msra.mxu0 0.0
        %252 = vmatprep.subr.mxu0 0.0
        %253 = vmatpush1.msra.mxu0 0.0
        %254 = vmatprep.subr.mxu0 0.0
        %255 = vmatpush1.msra.mxu0 0.0
        %256 = vmatprep.subr.mxu0 0.0
        %257 = vmatpush1.msra.mxu0 0.0
        %258 = vmatprep.subr.mxu0 0.0
        %259 = vmatpush1.msra.mxu0 0.0
        %260 = vmatprep.subr.mxu0 0.0
        %261 = vmatpush1.msra.mxu0 0.0
        %262 = vmatprep.subr.mxu0 0.0
        %263 = vmatpush1.msra.mxu0 0.0
        %264 = vmatprep.subr.mxu0 0.0
        %265 = vmatpush1.msra.mxu0 0.0
        %266 = vmatprep.subr.mxu0 0.0
        %267 = vmatpush1.msra.mxu0 0.0
        %268 = vmatprep.subr.mxu0 0.0
        %269 = vmatpush1.msra.mxu0 0.0
        %270 = vmatprep.subr.mxu0 0.0
        %271 = vmatpush1.msra.mxu0 0.0
        %272 = vmatprep.subr.mxu0 0.0
        %273 = vmatpush1.msra.mxu0 0.0
        %274 = vmatprep.subr.mxu0 0.0
        %275 = vmatpush1.msra.mxu0 0.0
        %276 = vmatprep.subr.mxu0 0.0
        %277 = vmatpush1.msra.mxu0 0.0
        %278 = vmatprep.subr.mxu0 0.0
        %279 = vmatpush1.msra.mxu0 0.0
        %280 = vmatprep.subr.mxu0 0.0
        %281 = vmatpush1.msra.mxu0 0.0
        %282 = vmatprep.subr.mxu0 0.0
        %283 = vmatpush1.msra.mxu0 0.0
        %284 = vmatprep.subr.mxu0 0.0
        %285 = vmatpush1.msra.mxu0 0.0
        %286 = vmatprep.subr.mxu0 0.0
        %287 = vmatpush1.msra.mxu0 0.0
        %288 = vmatprep.mubr.f32.mxu0 0.0
        %289 = vmatmul.mubr.f32.gmra.mrb[0].mxu0 %v222
        %v290 = vpop.f32.mrb[0].mxu0
        %v291 = vadd.f32 0.0, %v290
        %v292 = vpop.f32.mrb[0].mxu0
        %293 = vdwg.mxu0
        %v294 = vmul.f32 %v291, 0.35355338
        %v295 = vld [vmem:[#allocation7] sm:$0xff]
        %v296 = vld [vmem:[#allocation7 + $0x8] sm:$0xff]
        %v297 = vld [vmem:[#allocation7 + $0x10] sm:$0xff]
        %v298 = vld [vmem:[#allocation7 + $0x18] sm:$0xff]
        %300 = vrot.lane.b32.xlu0 %v291, 96
        %v301 = vpop.permute.xlu0 %300
        %vm302 = vcmask 64512
        %v304 = vsel %vm302, %v294, 0
        %v306 = vsel %vm302, %v301, 0
        %308 = vmatprep.subr.mxu0 0.0
        %309 = vmatpush1.xpose.msra.mxu0 %v306
        %310 = vmatprep.subr.mxu0 0.0
        %311 = vmatpush1.xpose.msra.mxu0 0.0
        %312 = vmatprep.subr.mxu0 0.0
        %313 = vmatpush1.xpose.msra.mxu0 0.0
        %314 = vmatprep.subr.mxu0 0.0
        %315 = vmatpush1.xpose.msra.mxu0 0.0
        %316 = vmatprep.subr.mxu0 0.0
        %317 = vmatpush1.xpose.msra.mxu0 0.0
        %318 = vmatprep.subr.mxu0 0.0
        %319 = vmatpush1.xpose.msra.mxu0 0.0
        %320 = vmatprep.subr.mxu0 0.0
        %321 = vmatpush1.xpose.msra.mxu0 0.0
        %322 = vmatprep.subr.mxu0 0.0
        %323 = vmatpush1.xpose.msra.mxu0 0.0
        %324 = vmatprep.subr.mxu0 0.0
        %325 = vmatpush1.xpose.msra.mxu0 0.0
        %326 = vmatprep.subr.mxu0 0.0
        %327 = vmatpush1.xpose.msra.mxu0 0.0
        %328 = vmatprep.subr.mxu0 0.0
        %329 = vmatpush1.xpose.msra.mxu0 0.0
        %330 = vmatprep.subr.mxu0 0.0
        %331 = vmatpush1.xpose.msra.mxu0 0.0
        %332 = vmatprep.subr.mxu0 0.0
        %333 = vmatpush1.xpose.msra.mxu0 0.0
        %334 = vmatprep.subr.mxu0 0.0
        %335 = vmatpush1.xpose.msra.mxu0 0.0
        %336 = vmatprep.subr.mxu0 0.0
        %337 = vmatpush1.xpose.msra.mxu0 0.0
        %338 = vmatprep.subr.mxu0 0.0
        %339 = vmatpush1.xpose.msra.mxu0 0.0
        %340 = vmatprep.subr.mxu0 0.0
        %341 = vmatpush1.xpose.msra.mxu0 0.0
        %342 = vmatprep.subr.mxu0 0.0
        %343 = vmatpush1.xpose.msra.mxu0 0.0
        %344 = vmatprep.subr.mxu0 0.0
        %345 = vmatpush1.xpose.msra.mxu0 0.0
        %346 = vmatprep.subr.mxu0 0.0
        %347 = vmatpush1.xpose.msra.mxu0 0.0
        %348 = vmatprep.subr.mxu0 0.0
        %349 = vmatpush1.xpose.msra.mxu0 0.0
        %350 = vmatprep.subr.mxu0 0.0
        %351 = vmatpush1.xpose.msra.mxu0 0.0
        %352 = vmatprep.subr.mxu0 0.0
        %353 = vmatpush1.xpose.msra.mxu0 0.0
        %354 = vmatprep.subr.mxu0 0.0
        %355 = vmatpush1.xpose.msra.mxu0 0.0
        %356 = vmatprep.subr.mxu0 0.0
        %357 = vmatpush1.xpose.msra.mxu0 0.0
        %358 = vmatprep.subr.mxu0 0.0
        %359 = vmatpush1.xpose.msra.mxu0 0.0
        %360 = vmatprep.subr.mxu0 0.0
        %361 = vmatpush1.xpose.msra.mxu0 0.0
        %362 = vmatprep.subr.mxu0 0.0
        %363 = vmatpush1.xpose.msra.mxu0 0.0
        %364 = vmatprep.subr.mxu0 0.0
        %365 = vmatpush1.xpose.msra.mxu0 0.0
        %366 = vmatprep.subr.mxu0 0.0
        %367 = vmatpush1.xpose.msra.mxu0 0.0
        %368 = vmatprep.subr.mxu0 0.0
        %369 = vmatpush1.xpose.msra.mxu0 0.0
        %370 = vmatprep.subr.mxu0 0.0
        %371 = vmatpush1.xpose.msra.mxu0 0.0
        %372 = vmatprep.mubr.f32.mxu0 0.0
        %373 = vmatmul.mubr.f32.gmra.mrb[0].mxu0 %v304
        %v374 = vpop.f32.mrb[0].mxu0
        %v375 = vadd.f32 0.0, %v374
        %v376 = vpop.f32.mrb[0].mxu0
        %377 = vdwg.mxu0
        %v378 = vsel %vm302, %v375, -inf
        %379 = vmax.xlane.f32.xlu0 %v378
        %v380 = vpop.xlane.xlu0 %379
        %v381 = vsub.f32 %v375, %v380
        %v382 = vmul.f32 %v381, 1.442695
        %v383 = vpow.pop %v382
        %v384 = vsel %vm302, %v383, 0.0
        %385 = vadd.xlane.f32.xlu0 %v384
        %v386 = vpop.xlane.xlu0 %385
        %387 = vrot.lane.b32.xlu0 %v291, 64
        %v388 = vpop.permute.xlu0 %387
        %v391 = vsel %vm302, %v383, 0
        %393 = vmatprep.subr.mxu0 0.0
        %394 = vmatpush1.msra.mxu0 %v388
        %395 = vmatprep.subr.mxu0 0.0
        %396 = vmatpush1.msra.mxu0 0.0
        %397 = vmatprep.subr.mxu0 0.0
        %398 = vmatpush1.msra.mxu0 0.0
        %399 = vmatprep.subr.mxu0 0.0
        %400 = vmatpush1.msra.mxu0 0.0
        %401 = vmatprep.subr.mxu0 0.0
        %402 = vmatpush1.msra.mxu0 0.0
        %403 = vmatprep.subr.mxu0 0.0
        %404 = vmatpush1.msra.mxu0 0.0
        %405 = vmatprep.subr.mxu0 0.0
        %406 = vmatpush1.msra.mxu0 0.0
        %407 = vmatprep.subr.mxu0 0.0
        %408 = vmatpush1.msra.mxu0 0.0
        %409 = vmatprep.subr.mxu0 0.0
        %410 = vmatpush1.msra.mxu0 0.0
        %411 = vmatprep.subr.mxu0 0.0
        %412 = vmatpush1.msra.mxu0 0.0
        %413 = vmatprep.subr.mxu0 0.0
        %414 = vmatpush1.msra.mxu0 0.0
        %415 = vmatprep.subr.mxu0 0.0
        %416 = vmatpush1.msra.mxu0 0.0
        %417 = vmatprep.subr.mxu0 0.0
        %418 = vmatpush1.msra.mxu0 0.0
        %419 = vmatprep.subr.mxu0 0.0
        %420 = vmatpush1.msra.mxu0 0.0
        %421 = vmatprep.subr.mxu0 0.0
        %422 = vmatpush1.msra.mxu0 0.0
        %423 = vmatprep.subr.mxu0 0.0
        %424 = vmatpush1.msra.mxu0 0.0
        %425 = vmatprep.subr.mxu0 0.0
        %426 = vmatpush1.msra.mxu0 0.0
        %427 = vmatprep.subr.mxu0 0.0
        %428 = vmatpush1.msra.mxu0 0.0
        %429 = vmatprep.subr.mxu0 0.0
        %430 = vmatpush1.msra.mxu0 0.0
        %431 = vmatprep.subr.mxu0 0.0
        %432 = vmatpush1.msra.mxu0 0.0
        %433 = vmatprep.subr.mxu0 0.0
        %434 = vmatpush1.msra.mxu0 0.0
        %435 = vmatprep.subr.mxu0 0.0
        %436 = vmatpush1.msra.mxu0 0.0
        %437 = vmatprep.subr.mxu0 0.0
        %438 = vmatpush1.msra.mxu0 0.0
        %439 = vmatprep.subr.mxu0 0.0
        %440 = vmatpush1.msra.mxu0 0.0
        %441 = vmatprep.subr.mxu0 0.0
        %442 = vmatpush1.msra.mxu0 0.0
        %443 = vmatprep.subr.mxu0 0.0
        %444 = vmatpush1.msra.mxu0 0.0
        %445 = vmatprep.subr.mxu0 0.0
        %446 = vmatpush1.msra.mxu0 0.0
        %447 = vmatprep.subr.mxu0 0.0
        %448 = vmatpush1.msra.mxu0 0.0
        %449 = vmatprep.subr.mxu0 0.0
        %450 = vmatpush1.msra.mxu0 0.0
        %451 = vmatprep.subr.mxu0 0.0
        %452 = vmatpush1.msra.mxu0 0.0
        %453 = vmatprep.subr.mxu0 0.0
        %454 = vmatpush1.msra.mxu0 0.0
        %455 = vmatprep.subr.mxu0 0.0
        %456 = vmatpush1.msra.mxu0 0.0
        %457 = vmatprep.mubr.f32.mxu0 0.0
        %458 = vmatmul.mubr.f32.gmra.mrb[0].mxu0 %v391
        %v459 = vpop.f32.mrb[0].mxu0
        %v460 = vadd.f32 0.0, %v459
        %v461 = vpop.f32.mrb[0].mxu0
        %462 = vdwg.mxu0
        %v463 = vrcp.pop %v386
        %v464 = vmul.f32 %v460, %v463
        %465 = vrot.lane.b32.xlu0 %v294, 120
        %v466 = vpop.permute.xlu0 %465
        %467 = vrot.lane.b32.xlu0 %v291, 88
        %v468 = vpop.permute.xlu0 %467
        %v469 = vsel %vm302, %v466, 0
        %v471 = vsel %vm302, %v468, 0
        %473 = vmatprep.subr.mxu0 0.0
        %474 = vmatpush1.xpose.msra.mxu0 %v471
        %475 = vmatprep.subr.mxu0 0.0
        %476 = vmatpush1.xpose.msra.mxu0 0.0
        %477 = vmatprep.subr.mxu0 0.0
        %478 = vmatpush1.xpose.msra.mxu0 0.0
        %479 = vmatprep.subr.mxu0 0.0
        %480 = vmatpush1.xpose.msra.mxu0 0.0
        %481 = vmatprep.subr.mxu0 0.0
        %482 = vmatpush1.xpose.msra.mxu0 0.0
        %483 = vmatprep.subr.mxu0 0.0
        %484 = vmatpush1.xpose.msra.mxu0 0.0
        %485 = vmatprep.subr.mxu0 0.0
        %486 = vmatpush1.xpose.msra.mxu0 0.0
        %487 = vmatprep.subr.mxu0 0.0
        %488 = vmatpush1.xpose.msra.mxu0 0.0
        %489 = vmatprep.subr.mxu0 0.0
        %490 = vmatpush1.xpose.msra.mxu0 0.0
        %491 = vmatprep.subr.mxu0 0.0
        %492 = vmatpush1.xpose.msra.mxu0 0.0
        %493 = vmatprep.subr.mxu0 0.0
        %494 = vmatpush1.xpose.msra.mxu0 0.0
        %495 = vmatprep.subr.mxu0 0.0
        %496 = vmatpush1.xpose.msra.mxu0 0.0
        %497 = vmatprep.subr.mxu0 0.0
        %498 = vmatpush1.xpose.msra.mxu0 0.0
        %499 = vmatprep.subr.mxu0 0.0
        %500 = vmatpush1.xpose.msra.mxu0 0.0
        %501 = vmatprep.subr.mxu0 0.0
        %502 = vmatpush1.xpose.msra.mxu0 0.0
        %503 = vmatprep.subr.mxu0 0.0
        %504 = vmatpush1.xpose.msra.mxu0 0.0
        %505 = vmatprep.subr.mxu0 0.0
        %506 = vmatpush1.xpose.msra.mxu0 0.0
        %507 = vmatprep.subr.mxu0 0.0
        %508 = vmatpush1.xpose.msra.mxu0 0.0
        %509 = vmatprep.subr.mxu0 0.0
        %510 = vmatpush1.xpose.msra.mxu0 0.0
        %511 = vmatprep.subr.mxu0 0.0
        %512 = vmatpush1.xpose.msra.mxu0 0.0
        %513 = vmatprep.subr.mxu0 0.0
        %514 = vmatpush1.xpose.msra.mxu0 0.0
        %515 = vmatprep.subr.mxu0 0.0
        %516 = vmatpush1.xpose.msra.mxu0 0.0
        %517 = vmatprep.subr.mxu0 0.0
        %518 = vmatpush1.xpose.msra.mxu0 0.0
        %519 = vmatprep.subr.mxu0 0.0
        %520 = vmatpush1.xpose.msra.mxu0 0.0
        %521 = vmatprep.subr.mxu0 0.0
        %522 = vmatpush1.xpose.msra.mxu0 0.0
        %523 = vmatprep.subr.mxu0 0.0
        %524 = vmatpush1.xpose.msra.mxu0 0.0
        %525 = vmatprep.subr.mxu0 0.0
        %526 = vmatpush1.xpose.msra.mxu0 0.0
        %527 = vmatprep.subr.mxu0 0.0
        %528 = vmatpush1.xpose.msra.mxu0 0.0
        %529 = vmatprep.subr.mxu0 0.0
        %530 = vmatpush1.xpose.msra.mxu0 0.0
        %531 = vmatprep.subr.mxu0 0.0
        %532 = vmatpush1.xpose.msra.mxu0 0.0
        %533 = vmatprep.subr.mxu0 0.0
        %534 = vmatpush1.xpose.msra.mxu0 0.0
        %535 = vmatprep.subr.mxu0 0.0
        %536 = vmatpush1.xpose.msra.mxu0 0.0
        %537 = vmatprep.mubr.f32.mxu0 0.0
        %538 = vmatmul.mubr.f32.gmra.mrb[0].mxu0 %v469
        %v539 = vpop.f32.mrb[0].mxu0
        %v540 = vadd.f32 0.0, %v539
        %v541 = vpop.f32.mrb[0].mxu0
        %542 = vdwg.mxu0
        %v543 = vsel %vm302, %v540, -inf
        %544 = vmax.xlane.f32.xlu0 %v543
        %v545 = vpop.xlane.xlu0 %544
        %v546 = vsub.f32 %v540, %v545
        %v547 = vmul.f32 %v546, 1.442695
        %v548 = vpow.pop %v547
        %v549 = vsel %vm302, %v548, 0.0
        %550 = vadd.xlane.f32.xlu0 %v549
        %v551 = vpop.xlane.xlu0 %550
        %552 = vrot.lane.b32.xlu0 %v291, 56
        %v553 = vpop.permute.xlu0 %552
        %v556 = vsel %vm302, %v548, 0
        %558 = vmatprep.subr.mxu0 0.0
        %559 = vmatpush1.msra.mxu0 %v553
        %560 = vmatprep.subr.mxu0 0.0
        %561 = vmatpush1.msra.mxu0 0.0
        %562 = vmatprep.subr.mxu0 0.0
        %563 = vmatpush1.msra.mxu0 0.0
        %564 = vmatprep.subr.mxu0 0.0
        %565 = vmatpush1.msra.mxu0 0.0
        %566 = vmatprep.subr.mxu0 0.0
        %567 = vmatpush1.msra.mxu0 0.0
        %568 = vmatprep.subr.mxu0 0.0
        %569 = vmatpush1.msra.mxu0 0.0
        %570 = vmatprep.subr.mxu0 0.0
        %571 = vmatpush1.msra.mxu0 0.0
        %572 = vmatprep.subr.mxu0 0.0
        %573 = vmatpush1.msra.mxu0 0.0
        %574 = vmatprep.subr.mxu0 0.0
        %575 = vmatpush1.msra.mxu0 0.0
        %576 = vmatprep.subr.mxu0 0.0
        %577 = vmatpush1.msra.mxu0 0.0
        %578 = vmatprep.subr.mxu0 0.0
        %579 = vmatpush1.msra.mxu0 0.0
        %580 = vmatprep.subr.mxu0 0.0
        %581 = vmatpush1.msra.mxu0 0.0
        %582 = vmatprep.subr.mxu0 0.0
        %583 = vmatpush1.msra.mxu0 0.0
        %584 = vmatprep.subr.mxu0 0.0
        %585 = vmatpush1.msra.mxu0 0.0
        %586 = vmatprep.subr.mxu0 0.0
        %587 = vmatpush1.msra.mxu0 0.0
        %588 = vmatprep.subr.mxu0 0.0
        %589 = vmatpush1.msra.mxu0 0.0
        %590 = vmatprep.subr.mxu0 0.0
        %591 = vmatpush1.msra.mxu0 0.0
        %592 = vmatprep.subr.mxu0 0.0
        %593 = vmatpush1.msra.mxu0 0.0
        %594 = vmatprep.subr.mxu0 0.0
        %595 = vmatpush1.msra.mxu0 0.0
        %596 = vmatprep.subr.mxu0 0.0
        %597 = vmatpush1.msra.mxu0 0.0
        %598 = vmatprep.subr.mxu0 0.0
        %599 = vmatpush1.msra.mxu0 0.0
        %600 = vmatprep.subr.mxu0 0.0
        %601 = vmatpush1.msra.mxu0 0.0
        %602 = vmatprep.subr.mxu0 0.0
        %603 = vmatpush1.msra.mxu0 0.0
        %604 = vmatprep.subr.mxu0 0.0
        %605 = vmatpush1.msra.mxu0 0.0
        %606 = vmatprep.subr.mxu0 0.0
        %607 = vmatpush1.msra.mxu0 0.0
        %608 = vmatprep.subr.mxu0 0.0
        %609 = vmatpush1.msra.mxu0 0.0
        %610 = vmatprep.subr.mxu0 0.0
        %611 = vmatpush1.msra.mxu0 0.0
        %612 = vmatprep.subr.mxu0 0.0
        %613 = vmatpush1.msra.mxu0 0.0
        %614 = vmatprep.subr.mxu0 0.0
        %615 = vmatpush1.msra.mxu0 0.0
        %616 = vmatprep.subr.mxu0 0.0
        %617 = vmatpush1.msra.mxu0 0.0
        %618 = vmatprep.subr.mxu0 0.0
        %619 = vmatpush1.msra.mxu0 0.0
        %620 = vmatprep.subr.mxu0 0.0
        %621 = vmatpush1.msra.mxu0 0.0
        %622 = vmatprep.mubr.f32.mxu0 0.0
        %623 = vmatmul.mubr.f32.gmra.mrb[0].mxu0 %v556
        %v624 = vpop.f32.mrb[0].mxu0
        %v625 = vadd.f32 0.0, %v624
        %v626 = vpop.f32.mrb[0].mxu0
        %627 = vdwg.mxu0
        %v628 = vrcp.pop %v551
        %v629 = vmul.f32 %v625, %v628
        %v631 = vsel %vm302, %v629, 0
        %633 = vmatprep.subr.mxu0 0.0
        %634 = vmatpush1.msra.mxu0 %v296
        %635 = vmatprep.subr.mxu0 0.0
        %636 = vmatpush1.msra.mxu0 0.0
        %637 = vmatprep.subr.mxu0 0.0
        %638 = vmatpush1.msra.mxu0 0.0
        %639 = vmatprep.subr.mxu0 0.0
        %640 = vmatpush1.msra.mxu0 0.0
        %641 = vmatprep.subr.mxu0 0.0
        %642 = vmatpush1.msra.mxu0 0.0
        %643 = vmatprep.subr.mxu0 0.0
        %644 = vmatpush1.msra.mxu0 0.0
        %645 = vmatprep.subr.mxu0 0.0
        %646 = vmatpush1.msra.mxu0 0.0
        %647 = vmatprep.subr.mxu0 0.0
        %648 = vmatpush1.msra.mxu0 0.0
        %649 = vmatprep.subr.mxu0 0.0
        %650 = vmatpush1.msra.mxu0 0.0
        %651 = vmatprep.subr.mxu0 0.0
        %652 = vmatpush1.msra.mxu0 0.0
        %653 = vmatprep.subr.mxu0 0.0
        %654 = vmatpush1.msra.mxu0 0.0
        %655 = vmatprep.subr.mxu0 0.0
        %656 = vmatpush1.msra.mxu0 0.0
        %657 = vmatprep.subr.mxu0 0.0
        %658 = vmatpush1.msra.mxu0 0.0
        %659 = vmatprep.subr.mxu0 0.0
        %660 = vmatpush1.msra.mxu0 0.0
        %661 = vmatprep.subr.mxu0 0.0
        %662 = vmatpush1.msra.mxu0 0.0
        %663 = vmatprep.subr.mxu0 0.0
        %664 = vmatpush1.msra.mxu0 0.0
        %665 = vmatprep.subr.mxu0 0.0
        %666 = vmatpush1.msra.mxu0 0.0
        %667 = vmatprep.subr.mxu0 0.0
        %668 = vmatpush1.msra.mxu0 0.0
        %669 = vmatprep.subr.mxu0 0.0
        %670 = vmatpush1.msra.mxu0 0.0
        %671 = vmatprep.subr.mxu0 0.0
        %672 = vmatpush1.msra.mxu0 0.0
        %673 = vmatprep.subr.mxu0 0.0
        %674 = vmatpush1.msra.mxu0 0.0
        %675 = vmatprep.subr.mxu0 0.0
        %676 = vmatpush1.msra.mxu0 0.0
        %677 = vmatprep.subr.mxu0 0.0
        %678 = vmatpush1.msra.mxu0 0.0
        %679 = vmatprep.subr.mxu0 0.0
        %680 = vmatpush1.msra.mxu0 0.0
        %681 = vmatprep.subr.mxu0 0.0
        %682 = vmatpush1.msra.mxu0 0.0
        %683 = vmatprep.subr.mxu0 0.0
        %684 = vmatpush1.msra.mxu0 0.0
        %685 = vmatprep.subr.mxu0 0.0
        %686 = vmatpush1.msra.mxu0 0.0
        %687 = vmatprep.subr.mxu0 0.0
        %688 = vmatpush1.msra.mxu0 0.0
        %689 = vmatprep.subr.mxu0 0.0
        %690 = vmatpush1.msra.mxu0 0.0
        %691 = vmatprep.subr.mxu0 0.0
        %692 = vmatpush1.msra.mxu0 0.0
        %693 = vmatprep.subr.mxu0 0.0
        %694 = vmatpush1.msra.mxu0 0.0
        %695 = vmatprep.subr.mxu0 0.0
        %696 = vmatpush1.msra.mxu0 0.0
        %697 = vmatprep.mubr.f32.mxu0 0.0
        %698 = vmatmul.mubr.f32.gmra.mrb[0].mxu0 %v631
        %v699 = vpop.f32.mrb[0].mxu0
        %v700 = vadd.f32 0.0, %v699
        %v701 = vpop.f32.mrb[0].mxu0
        %702 = vdwg.mxu0
        %v704 = vsel %vm302, %v464, 0
        %706 = vmatprep.subr.mxu0 0.0
        %707 = vmatpush1.msra.mxu0 %v295
        %708 = vmatprep.subr.mxu0 0.0
        %709 = vmatpush1.msra.mxu0 0.0
        %710 = vmatprep.subr.mxu0 0.0
        %711 = vmatpush1.msra.mxu0 0.0
        %712 = vmatprep.subr.mxu0 0.0
        %713 = vmatpush1.msra.mxu0 0.0
        %714 = vmatprep.subr.mxu0 0.0
        %715 = vmatpush1.msra.mxu0 0.0
        %716 = vmatprep.subr.mxu0 0.0
        %717 = vmatpush1.msra.mxu0 0.0
        %718 = vmatprep.subr.mxu0 0.0
        %719 = vmatpush1.msra.mxu0 0.0
        %720 = vmatprep.subr.mxu0 0.0
        %721 = vmatpush1.msra.mxu0 0.0
        %722 = vmatprep.subr.mxu0 0.0
        %723 = vmatpush1.msra.mxu0 0.0
        %724 = vmatprep.subr.mxu0 0.0
        %725 = vmatpush1.msra.mxu0 0.0
        %726 = vmatprep.subr.mxu0 0.0
        %727 = vmatpush1.msra.mxu0 0.0
        %728 = vmatprep.subr.mxu0 0.0
        %729 = vmatpush1.msra.mxu0 0.0
        %730 = vmatprep.subr.mxu0 0.0
        %731 = vmatpush1.msra.mxu0 0.0
        %732 = vmatprep.subr.mxu0 0.0
        %733 = vmatpush1.msra.mxu0 0.0
        %734 = vmatprep.subr.mxu0 0.0
        %735 = vmatpush1.msra.mxu0 0.0
        %736 = vmatprep.subr.mxu0 0.0
        %737 = vmatpush1.msra.mxu0 0.0
        %738 = vmatprep.subr.mxu0 0.0
        %739 = vmatpush1.msra.mxu0 0.0
        %740 = vmatprep.subr.mxu0 0.0
        %741 = vmatpush1.msra.mxu0 0.0
        %742 = vmatprep.subr.mxu0 0.0
        %743 = vmatpush1.msra.mxu0 0.0
        %744 = vmatprep.subr.mxu0 0.0
        %745 = vmatpush1.msra.mxu0 0.0
        %746 = vmatprep.subr.mxu0 0.0
        %747 = vmatpush1.msra.mxu0 0.0
        %748 = vmatprep.subr.mxu0 0.0
        %749 = vmatpush1.msra.mxu0 0.0
        %750 = vmatprep.subr.mxu0 0.0
        %751 = vmatpush1.msra.mxu0 0.0
        %752 = vmatprep.subr.mxu0 0.0
        %753 = vmatpush1.msra.mxu0 0.0
        %754 = vmatprep.subr.mxu0 0.0
        %755 = vmatpush1.msra.mxu0 0.0
        %756 = vmatprep.subr.mxu0 0.0
        %757 = vmatpush1.msra.mxu0 0.0
        %758 = vmatprep.subr.mxu0 0.0
        %759 = vmatpush1.msra.mxu0 0.0
        %760 = vmatprep.subr.mxu0 0.0
        %761 = vmatpush1.msra.mxu0 0.0
        %762 = vmatprep.subr.mxu0 0.0
        %763 = vmatpush1.msra.mxu0 0.0
        %764 = vmatprep.subr.mxu0 0.0
        %765 = vmatpush1.msra.mxu0 0.0
        %766 = vmatprep.subr.mxu0 0.0
        %767 = vmatpush1.msra.mxu0 0.0
        %768 = vmatprep.subr.mxu0 0.0
        %769 = vmatpush1.msra.mxu0 0.0
        %770 = vmatprep.mubr.f32.mxu0 0.0
        %771 = vmatmul.mubr.f32.gmra.mrb[0].mxu0 %v704
        %v772 = vpop.f32.mrb[0].mxu0
        %v773 = vadd.f32 %v700, %v772
        %v774 = vpop.f32.mrb[0].mxu0
        %775 = vdwg.mxu0
        %776 = vrot.lane.b32.xlu0 %v294, 112
        %v777 = vpop.permute.xlu0 %776
        %778 = vrot.lane.b32.xlu0 %v291, 80
        %v779 = vpop.permute.xlu0 %778
        %v780 = vsel %vm302, %v777, 0
        %v782 = vsel %vm302, %v779, 0
        %784 = vmatprep.subr.mxu0 0.0
        %785 = vmatpush1.xpose.msra.mxu0 %v782
        %786 = vmatprep.subr.mxu0 0.0
        %787 = vmatpush1.xpose.msra.mxu0 0.0
        %788 = vmatprep.subr.mxu0 0.0
        %789 = vmatpush1.xpose.msra.mxu0 0.0
        %790 = vmatprep.subr.mxu0 0.0
        %791 = vmatpush1.xpose.msra.mxu0 0.0
        %792 = vmatprep.subr.mxu0 0.0
        %793 = vmatpush1.xpose.msra.mxu0 0.0
        %794 = vmatprep.subr.mxu0 0.0
        %795 = vmatpush1.xpose.msra.mxu0 0.0
        %796 = vmatprep.subr.mxu0 0.0
        %797 = vmatpush1.xpose.msra.mxu0 0.0
        %798 = vmatprep.subr.mxu0 0.0
        %799 = vmatpush1.xpose.msra.mxu0 0.0
        %800 = vmatprep.subr.mxu0 0.0
        %801 = vmatpush1.xpose.msra.mxu0 0.0
        %802 = vmatprep.subr.mxu0 0.0
        %803 = vmatpush1.xpose.msra.mxu0 0.0
        %804 = vmatprep.subr.mxu0 0.0
        %805 = vmatpush1.xpose.msra.mxu0 0.0
        %806 = vmatprep.subr.mxu0 0.0
        %807 = vmatpush1.xpose.msra.mxu0 0.0
        %808 = vmatprep.subr.mxu0 0.0
        %809 = vmatpush1.xpose.msra.mxu0 0.0
        %810 = vmatprep.subr.mxu0 0.0
        %811 = vmatpush1.xpose.msra.mxu0 0.0
        %812 = vmatprep.subr.mxu0 0.0
        %813 = vmatpush1.xpose.msra.mxu0 0.0
        %814 = vmatprep.subr.mxu0 0.0
        %815 = vmatpush1.xpose.msra.mxu0 0.0
        %816 = vmatprep.subr.mxu0 0.0
        %817 = vmatpush1.xpose.msra.mxu0 0.0
        %818 = vmatprep.subr.mxu0 0.0
        %819 = vmatpush1.xpose.msra.mxu0 0.0
        %820 = vmatprep.subr.mxu0 0.0
        %821 = vmatpush1.xpose.msra.mxu0 0.0
        %822 = vmatprep.subr.mxu0 0.0
        %823 = vmatpush1.xpose.msra.mxu0 0.0
        %824 = vmatprep.subr.mxu0 0.0
        %825 = vmatpush1.xpose.msra.mxu0 0.0
        %826 = vmatprep.subr.mxu0 0.0
        %827 = vmatpush1.xpose.msra.mxu0 0.0
        %828 = vmatprep.subr.mxu0 0.0
        %829 = vmatpush1.xpose.msra.mxu0 0.0
        %830 = vmatprep.subr.mxu0 0.0
        %831 = vmatpush1.xpose.msra.mxu0 0.0
        %832 = vmatprep.subr.mxu0 0.0
        %833 = vmatpush1.xpose.msra.mxu0 0.0
        %834 = vmatprep.subr.mxu0 0.0
        %835 = vmatpush1.xpose.msra.mxu0 0.0
        %836 = vmatprep.subr.mxu0 0.0
        %837 = vmatpush1.xpose.msra.mxu0 0.0
        %838 = vmatprep.subr.mxu0 0.0
        %839 = vmatpush1.xpose.msra.mxu0 0.0
        %840 = vmatprep.subr.mxu0 0.0
        %841 = vmatpush1.xpose.msra.mxu0 0.0
        %842 = vmatprep.subr.mxu0 0.0
        %843 = vmatpush1.xpose.msra.mxu0 0.0
        %844 = vmatprep.subr.mxu0 0.0
        %845 = vmatpush1.xpose.msra.mxu0 0.0
        %846 = vmatprep.subr.mxu0 0.0
        %847 = vmatpush1.xpose.msra.mxu0 0.0
        %848 = vmatprep.mubr.f32.mxu0 0.0
        %849 = vmatmul.mubr.f32.gmra.mrb[0].mxu0 %v780
        %v850 = vpop.f32.mrb[0].mxu0
        %v851 = vadd.f32 0.0, %v850
        %v852 = vpop.f32.mrb[0].mxu0
        %853 = vdwg.mxu0
        %v854 = vsel %vm302, %v851, -inf
        %855 = vmax.xlane.f32.xlu0 %v854
        %v856 = vpop.xlane.xlu0 %855
        %v857 = vsub.f32 %v851, %v856
        %v858 = vmul.f32 %v857, 1.442695
        %v859 = vpow.pop %v858
        %v860 = vsel %vm302, %v859, 0.0
        %861 = vadd.xlane.f32.xlu0 %v860
        %v862 = vpop.xlane.xlu0 %861
        %863 = vrot.lane.b32.xlu0 %v291, 48
        %v864 = vpop.permute.xlu0 %863
        %v867 = vsel %vm302, %v859, 0
        %869 = vmatprep.subr.mxu0 0.0
        %870 = vmatpush1.msra.mxu0 %v864
        %871 = vmatprep.subr.mxu0 0.0
        %872 = vmatpush1.msra.mxu0 0.0
        %873 = vmatprep.subr.mxu0 0.0
        %874 = vmatpush1.msra.mxu0 0.0
        %875 = vmatprep.subr.mxu0 0.0
        %876 = vmatpush1.msra.mxu0 0.0
        %877 = vmatprep.subr.mxu0 0.0
        %878 = vmatpush1.msra.mxu0 0.0
        %879 = vmatprep.subr.mxu0 0.0
        %880 = vmatpush1.msra.mxu0 0.0
        %881 = vmatprep.subr.mxu0 0.0
        %882 = vmatpush1.msra.mxu0 0.0
        %883 = vmatprep.subr.mxu0 0.0
        %884 = vmatpush1.msra.mxu0 0.0
        %885 = vmatprep.subr.mxu0 0.0
        %886 = vmatpush1.msra.mxu0 0.0
        %887 = vmatprep.subr.mxu0 0.0
        %888 = vmatpush1.msra.mxu0 0.0
        %889 = vmatprep.subr.mxu0 0.0
        %890 = vmatpush1.msra.mxu0 0.0
        %891 = vmatprep.subr.mxu0 0.0
        %892 = vmatpush1.msra.mxu0 0.0
        %893 = vmatprep.subr.mxu0 0.0
        %894 = vmatpush1.msra.mxu0 0.0
        %895 = vmatprep.subr.mxu0 0.0
        %896 = vmatpush1.msra.mxu0 0.0
        %897 = vmatprep.subr.mxu0 0.0
        %898 = vmatpush1.msra.mxu0 0.0
        %899 = vmatprep.subr.mxu0 0.0
        %900 = vmatpush1.msra.mxu0 0.0
        %901 = vmatprep.subr.mxu0 0.0
        %902 = vmatpush1.msra.mxu0 0.0
        %903 = vmatprep.subr.mxu0 0.0
        %904 = vmatpush1.msra.mxu0 0.0
        %905 = vmatprep.subr.mxu0 0.0
        %906 = vmatpush1.msra.mxu0 0.0
        %907 = vmatprep.subr.mxu0 0.0
        %908 = vmatpush1.msra.mxu0 0.0
        %909 = vmatprep.subr.mxu0 0.0
        %910 = vmatpush1.msra.mxu0 0.0
        %911 = vmatprep.subr.mxu0 0.0
        %912 = vmatpush1.msra.mxu0 0.0
        %913 = vmatprep.subr.mxu0 0.0
        %914 = vmatpush1.msra.mxu0 0.0
        %915 = vmatprep.subr.mxu0 0.0
        %916 = vmatpush1.msra.mxu0 0.0
        %917 = vmatprep.subr.mxu0 0.0
        %918 = vmatpush1.msra.mxu0 0.0
        %919 = vmatprep.subr.mxu0 0.0
        %920 = vmatpush1.msra.mxu0 0.0
        %921 = vmatprep.subr.mxu0 0.0
        %922 = vmatpush1.msra.mxu0 0.0
        %923 = vmatprep.subr.mxu0 0.0
        %924 = vmatpush1.msra.mxu0 0.0
        %925 = vmatprep.subr.mxu0 0.0
        %926 = vmatpush1.msra.mxu0 0.0
        %927 = vmatprep.subr.mxu0 0.0
        %928 = vmatpush1.msra.mxu0 0.0
        %929 = vmatprep.subr.mxu0 0.0
        %930 = vmatpush1.msra.mxu0 0.0
        %931 = vmatprep.subr.mxu0 0.0
        %932 = vmatpush1.msra.mxu0 0.0
        %933 = vmatprep.mubr.f32.mxu0 0.0
        %934 = vmatmul.mubr.f32.gmra.mrb[0].mxu0 %v867
        %v935 = vpop.f32.mrb[0].mxu0
        %v936 = vadd.f32 0.0, %v935
        %v937 = vpop.f32.mrb[0].mxu0
        %938 = vdwg.mxu0
        %v939 = vrcp.pop %v862
        %v940 = vmul.f32 %v936, %v939
        %v942 = vsel %vm302, %v940, 0
        %944 = vmatprep.subr.mxu0 0.0
        %945 = vmatpush1.msra.mxu0 %v297
        %946 = vmatprep.subr.mxu0 0.0
        %947 = vmatpush1.msra.mxu0 0.0
        %948 = vmatprep.subr.mxu0 0.0
        %949 = vmatpush1.msra.mxu0 0.0
        %950 = vmatprep.subr.mxu0 0.0
        %951 = vmatpush1.msra.mxu0 0.0
        %952 = vmatprep.subr.mxu0 0.0
        %953 = vmatpush1.msra.mxu0 0.0
        %954 = vmatprep.subr.mxu0 0.0
        %955 = vmatpush1.msra.mxu0 0.0
        %956 = vmatprep.subr.mxu0 0.0
        %957 = vmatpush1.msra.mxu0 0.0
        %958 = vmatprep.subr.mxu0 0.0
        %959 = vmatpush1.msra.mxu0 0.0
        %960 = vmatprep.subr.mxu0 0.0
        %961 = vmatpush1.msra.mxu0 0.0
        %962 = vmatprep.subr.mxu0 0.0
        %963 = vmatpush1.msra.mxu0 0.0
        %964 = vmatprep.subr.mxu0 0.0
        %965 = vmatpush1.msra.mxu0 0.0
        %966 = vmatprep.subr.mxu0 0.0
        %967 = vmatpush1.msra.mxu0 0.0
        %968 = vmatprep.subr.mxu0 0.0
        %969 = vmatpush1.msra.mxu0 0.0
        %970 = vmatprep.subr.mxu0 0.0
        %971 = vmatpush1.msra.mxu0 0.0
        %972 = vmatprep.subr.mxu0 0.0
        %973 = vmatpush1.msra.mxu0 0.0
        %974 = vmatprep.subr.mxu0 0.0
        %975 = vmatpush1.msra.mxu0 0.0
        %976 = vmatprep.subr.mxu0 0.0
        %977 = vmatpush1.msra.mxu0 0.0
        %978 = vmatprep.subr.mxu0 0.0
        %979 = vmatpush1.msra.mxu0 0.0
        %980 = vmatprep.subr.mxu0 0.0
        %981 = vmatpush1.msra.mxu0 0.0
        %982 = vmatprep.subr.mxu0 0.0
        %983 = vmatpush1.msra.mxu0 0.0
        %984 = vmatprep.subr.mxu0 0.0
        %985 = vmatpush1.msra.mxu0 0.0
        %986 = vmatprep.subr.mxu0 0.0
        %987 = vmatpush1.msra.mxu0 0.0
        %988 = vmatprep.subr.mxu0 0.0
        %989 = vmatpush1.msra.mxu0 0.0
        %990 = vmatprep.subr.mxu0 0.0
        %991 = vmatpush1.msra.mxu0 0.0
        %992 = vmatprep.subr.mxu0 0.0
        %993 = vmatpush1.msra.mxu0 0.0
        %994 = vmatprep.subr.mxu0 0.0
        %995 = vmatpush1.msra.mxu0 0.0
        %996 = vmatprep.subr.mxu0 0.0
        %997 = vmatpush1.msra.mxu0 0.0
        %998 = vmatprep.subr.mxu0 0.0
        %999 = vmatpush1.msra.mxu0 0.0
        %1000 = vmatprep.subr.mxu0 0.0
        %1001 = vmatpush1.msra.mxu0 0.0
        %1002 = vmatprep.subr.mxu0 0.0
        %1003 = vmatpush1.msra.mxu0 0.0
        %1004 = vmatprep.subr.mxu0 0.0
        %1005 = vmatpush1.msra.mxu0 0.0
        %1006 = vmatprep.subr.mxu0 0.0
        %1007 = vmatpush1.msra.mxu0 0.0
        %1008 = vmatprep.mubr.f32.mxu0 0.0
        %1009 = vmatmul.mubr.f32.gmra.mrb[0].mxu0 %v942
        %v1010 = vpop.f32.mrb[0].mxu0
        %v1011 = vadd.f32 0.0, %v1010
        %v1012 = vpop.f32.mrb[0].mxu0
        %1013 = vdwg.mxu0
        %v1014 = vadd.f32 %v773, %v1011
        %1015 = vrot.lane.b32.xlu0 %v294, 104
        %v1016 = vpop.permute.xlu0 %1015
        %1017 = vrot.lane.b32.xlu0 %v291, 72
        %v1018 = vpop.permute.xlu0 %1017
        %v1019 = vsel %vm302, %v1016, 0
        %v1021 = vsel %vm302, %v1018, 0
        %1023 = vmatprep.subr.mxu0 0.0
        %1024 = vmatpush1.xpose.msra.mxu0 %v1021
        %1025 = vmatprep.subr.mxu0 0.0
        %1026 = vmatpush1.xpose.msra.mxu0 0.0
        %1027 = vmatprep.subr.mxu0 0.0
        %1028 = vmatpush1.xpose.msra.mxu0 0.0
        %1029 = vmatprep.subr.mxu0 0.0
        %1030 = vmatpush1.xpose.msra.mxu0 0.0
        %1031 = vmatprep.subr.mxu0 0.0
        %1032 = vmatpush1.xpose.msra.mxu0 0.0
        %1033 = vmatprep.subr.mxu0 0.0
        %1034 = vmatpush1.xpose.msra.mxu0 0.0
        %1035 = vmatprep.subr.mxu0 0.0
        %1036 = vmatpush1.xpose.msra.mxu0 0.0
        %1037 = vmatprep.subr.mxu0 0.0
        %1038 = vmatpush1.xpose.msra.mxu0 0.0
        %1039 = vmatprep.subr.mxu0 0.0
        %1040 = vmatpush1.xpose.msra.mxu0 0.0
        %1041 = vmatprep.subr.mxu0 0.0
        %1042 = vmatpush1.xpose.msra.mxu0 0.0
        %1043 = vmatprep.subr.mxu0 0.0
        %1044 = vmatpush1.xpose.msra.mxu0 0.0
        %1045 = vmatprep.subr.mxu0 0.0
        %1046 = vmatpush1.xpose.msra.mxu0 0.0
        %1047 = vmatprep.subr.mxu0 0.0
        %1048 = vmatpush1.xpose.msra.mxu0 0.0
        %1049 = vmatprep.subr.mxu0 0.0
        %1050 = vmatpush1.xpose.msra.mxu0 0.0
        %1051 = vmatprep.subr.mxu0 0.0
        %1052 = vmatpush1.xpose.msra.mxu0 0.0
        %1053 = vmatprep.subr.mxu0 0.0
        %1054 = vmatpush1.xpose.msra.mxu0 0.0
        %1055 = vmatprep.subr.mxu0 0.0
        %1056 = vmatpush1.xpose.msra.mxu0 0.0
        %1057 = vmatprep.subr.mxu0 0.0
        %1058 = vmatpush1.xpose.msra.mxu0 0.0
        %1059 = vmatprep.subr.mxu0 0.0
        %1060 = vmatpush1.xpose.msra.mxu0 0.0
        %1061 = vmatprep.subr.mxu0 0.0
        %1062 = vmatpush1.xpose.msra.mxu0 0.0
        %1063 = vmatprep.subr.mxu0 0.0
        %1064 = vmatpush1.xpose.msra.mxu0 0.0
        %1065 = vmatprep.subr.mxu0 0.0
        %1066 = vmatpush1.xpose.msra.mxu0 0.0
        %1067 = vmatprep.subr.mxu0 0.0
        %1068 = vmatpush1.xpose.msra.mxu0 0.0
        %1069 = vmatprep.subr.mxu0 0.0
        %1070 = vmatpush1.xpose.msra.mxu0 0.0
        %1071 = vmatprep.subr.mxu0 0.0
        %1072 = vmatpush1.xpose.msra.mxu0 0.0
        %1073 = vmatprep.subr.mxu0 0.0
        %1074 = vmatpush1.xpose.msra.mxu0 0.0
        %1075 = vmatprep.subr.mxu0 0.0
        %1076 = vmatpush1.xpose.msra.mxu0 0.0
        %1077 = vmatprep.subr.mxu0 0.0
        %1078 = vmatpush1.xpose.msra.mxu0 0.0
        %1079 = vmatprep.subr.mxu0 0.0
        %1080 = vmatpush1.xpose.msra.mxu0 0.0
        %1081 = vmatprep.subr.mxu0 0.0
        %1082 = vmatpush1.xpose.msra.mxu0 0.0
        %1083 = vmatprep.subr.mxu0 0.0
        %1084 = vmatpush1.xpose.msra.mxu0 0.0
        %1085 = vmatprep.subr.mxu0 0.0
        %1086 = vmatpush1.xpose.msra.mxu0 0.0
        %1087 = vmatprep.mubr.f32.mxu0 0.0
        %1088 = vmatmul.mubr.f32.gmra.mrb[0].mxu0 %v1019
        %v1089 = vpop.f32.mrb[0].mxu0
        %v1090 = vadd.f32 0.0, %v1089
        %v1091 = vpop.f32.mrb[0].mxu0
        %1092 = vdwg.mxu0
        %v1093 = vsel %vm302, %v1090, -inf
        %1094 = vmax.xlane.f32.xlu0 %v1093
        %v1095 = vpop.xlane.xlu0 %1094
        %v1096 = vsub.f32 %v1090, %v1095
        %v1097 = vmul.f32 %v1096, 1.442695
        %v1098 = vpow.pop %v1097
        %v1099 = vsel %vm302, %v1098, 0.0
        %1100 = vadd.xlane.f32.xlu0 %v1099
        %v1101 = vpop.xlane.xlu0 %1100
        %1102 = vrot.lane.b32.xlu0 %v291, 40
        %v1103 = vpop.permute.xlu0 %1102
        %v1106 = vsel %vm302, %v1098, 0
        %1108 = vmatprep.subr.mxu0 0.0
        %1109 = vmatpush1.msra.mxu0 %v1103
        %1110 = vmatprep.subr.mxu0 0.0
        %1111 = vmatpush1.msra.mxu0 0.0
        %1112 = vmatprep.subr.mxu0 0.0
        %1113 = vmatpush1.msra.mxu0 0.0
        %1114 = vmatprep.subr.mxu0 0.0
        %1115 = vmatpush1.msra.mxu0 0.0
        %1116 = vmatprep.subr.mxu0 0.0
        %1117 = vmatpush1.msra.mxu0 0.0
        %1118 = vmatprep.subr.mxu0 0.0
        %1119 = vmatpush1.msra.mxu0 0.0
        %1120 = vmatprep.subr.mxu0 0.0
        %1121 = vmatpush1.msra.mxu0 0.0
        %1122 = vmatprep.subr.mxu0 0.0
        %1123 = vmatpush1.msra.mxu0 0.0
        %1124 = vmatprep.subr.mxu0 0.0
        %1125 = vmatpush1.msra.mxu0 0.0
        %1126 = vmatprep.subr.mxu0 0.0
        %1127 = vmatpush1.msra.mxu0 0.0
        %1128 = vmatprep.subr.mxu0 0.0
        %1129 = vmatpush1.msra.mxu0 0.0
        %1130 = vmatprep.subr.mxu0 0.0
        %1131 = vmatpush1.msra.mxu0 0.0
        %1132 = vmatprep.subr.mxu0 0.0
        %1133 = vmatpush1.msra.mxu0 0.0
        %1134 = vmatprep.subr.mxu0 0.0
        %1135 = vmatpush1.msra.mxu0 0.0
        %1136 = vmatprep.subr.mxu0 0.0
        %1137 = vmatpush1.msra.mxu0 0.0
        %1138 = vmatprep.subr.mxu0 0.0
        %1139 = vmatpush1.msra.mxu0 0.0
        %1140 = vmatprep.subr.mxu0 0.0
        %1141 = vmatpush1.msra.mxu0 0.0
        %1142 = vmatprep.subr.mxu0 0.0
        %1143 = vmatpush1.msra.mxu0 0.0
        %1144 = vmatprep.subr.mxu0 0.0
        %1145 = vmatpush1.msra.mxu0 0.0
        %1146 = vmatprep.subr.mxu0 0.0
        %1147 = vmatpush1.msra.mxu0 0.0
        %1148 = vmatprep.subr.mxu0 0.0
        %1149 = vmatpush1.msra.mxu0 0.0
        %1150 = vmatprep.subr.mxu0 0.0
        %1151 = vmatpush1.msra.mxu0 0.0
        %1152 = vmatprep.subr.mxu0 0.0
        %1153 = vmatpush1.msra.mxu0 0.0
        %1154 = vmatprep.subr.mxu0 0.0
        %1155 = vmatpush1.msra.mxu0 0.0
        %1156 = vmatprep.subr.mxu0 0.0
        %1157 = vmatpush1.msra.mxu0 0.0
        %1158 = vmatprep.subr.mxu0 0.0
        %1159 = vmatpush1.msra.mxu0 0.0
        %1160 = vmatprep.subr.mxu0 0.0
        %1161 = vmatpush1.msra.mxu0 0.0
        %1162 = vmatprep.subr.mxu0 0.0
        %1163 = vmatpush1.msra.mxu0 0.0
        %1164 = vmatprep.subr.mxu0 0.0
        %1165 = vmatpush1.msra.mxu0 0.0
        %1166 = vmatprep.subr.mxu0 0.0
        %1167 = vmatpush1.msra.mxu0 0.0
        %1168 = vmatprep.subr.mxu0 0.0
        %1169 = vmatpush1.msra.mxu0 0.0
        %1170 = vmatprep.subr.mxu0 0.0
        %1171 = vmatpush1.msra.mxu0 0.0
        %1172 = vmatprep.mubr.f32.mxu0 0.0
        %1173 = vmatmul.mubr.f32.gmra.mrb[0].mxu0 %v1106
        %v1174 = vpop.f32.mrb[0].mxu0
        %v1175 = vadd.f32 0.0, %v1174
        %v1176 = vpop.f32.mrb[0].mxu0
        %1177 = vdwg.mxu0
        %v1178 = vrcp.pop %v1101
        %v1179 = vmul.f32 %v1175, %v1178
        %v1181 = vsel %vm302, %v1179, 0
        %1183 = vmatprep.subr.mxu0 0.0
        %1184 = vmatpush1.msra.mxu0 %v298
        %1185 = vmatprep.subr.mxu0 0.0
        %1186 = vmatpush1.msra.mxu0 0.0
        %1187 = vmatprep.subr.mxu0 0.0
        %1188 = vmatpush1.msra.mxu0 0.0
        %1189 = vmatprep.subr.mxu0 0.0
        %1190 = vmatpush1.msra.mxu0 0.0
        %1191 = vmatprep.subr.mxu0 0.0
        %1192 = vmatpush1.msra.mxu0 0.0
        %1193 = vmatprep.subr.mxu0 0.0
        %1194 = vmatpush1.msra.mxu0 0.0
        %1195 = vmatprep.subr.mxu0 0.0
        %1196 = vmatpush1.msra.mxu0 0.0
        %1197 = vmatprep.subr.mxu0 0.0
        %1198 = vmatpush1.msra.mxu0 0.0
        %1199 = vmatprep.subr.mxu0 0.0
        %1200 = vmatpush1.msra.mxu0 0.0
        %1201 = vmatprep.subr.mxu0 0.0
        %1202 = vmatpush1.msra.mxu0 0.0
        %1203 = vmatprep.subr.mxu0 0.0
        %1204 = vmatpush1.msra.mxu0 0.0
        %1205 = vmatprep.subr.mxu0 0.0
        %1206 = vmatpush1.msra.mxu0 0.0
        %1207 = vmatprep.subr.mxu0 0.0
        %1208 = vmatpush1.msra.mxu0 0.0
        %1209 = vmatprep.subr.mxu0 0.0
        %1210 = vmatpush1.msra.mxu0 0.0
        %1211 = vmatprep.subr.mxu0 0.0
        %1212 = vmatpush1.msra.mxu0 0.0
        %1213 = vmatprep.subr.mxu0 0.0
        %1214 = vmatpush1.msra.mxu0 0.0
        %1215 = vmatprep.subr.mxu0 0.0
        %1216 = vmatpush1.msra.mxu0 0.0
        %1217 = vmatprep.subr.mxu0 0.0
        %1218 = vmatpush1.msra.mxu0 0.0
        %1219 = vmatprep.subr.mxu0 0.0
        %1220 = vmatpush1.msra.mxu0 0.0
        %1221 = vmatprep.subr.mxu0 0.0
        %1222 = vmatpush1.msra.mxu0 0.0
        %1223 = vmatprep.subr.mxu0 0.0
        %1224 = vmatpush1.msra.mxu0 0.0
        %1225 = vmatprep.subr.mxu0 0.0
        %1226 = vmatpush1.msra.mxu0 0.0
        %1227 = vmatprep.subr.mxu0 0.0
        %1228 = vmatpush1.msra.mxu0 0.0
        %1229 = vmatprep.subr.mxu0 0.0
        %1230 = vmatpush1.msra.mxu0 0.0
        %1231 = vmatprep.subr.mxu0 0.0
        %1232 = vmatpush1.msra.mxu0 0.0
        %1233 = vmatprep.subr.mxu0 0.0
        %1234 = vmatpush1.msra.mxu0 0.0
        %1235 = vmatprep.subr.mxu0 0.0
        %1236 = vmatpush1.msra.mxu0 0.0
        %1237 = vmatprep.subr.mxu0 0.0
        %1238 = vmatpush1.msra.mxu0 0.0
        %1239 = vmatprep.subr.mxu0 0.0
        %1240 = vmatpush1.msra.mxu0 0.0
        %1241 = vmatprep.subr.mxu0 0.0
        %1242 = vmatpush1.msra.mxu0 0.0
        %1243 = vmatprep.subr.mxu0 0.0
        %1244 = vmatpush1.msra.mxu0 0.0
        %1245 = vmatprep.subr.mxu0 0.0
        %1246 = vmatpush1.msra.mxu0 0.0
        %1247 = vmatprep.mubr.f32.mxu0 0.0
        %1248 = vmatmul.mubr.f32.gmra.mrb[0].mxu0 %v1181
        %v1249 = vpop.f32.mrb[0].mxu0
        %v1250 = vadd.f32 0.0, %v1249
        %v1251 = vpop.f32.mrb[0].mxu0
        %1252 = vdwg.mxu0
        %v1253 = vadd.f32 %v1014, %v1250
        %1254 = vst.msk [vmem:[%s214] sm:$0xff] %vm220, %v1253
        %s1255 = sand.u32 %s97, 1
        %s1256 = scalar_lea.sflag [#allocation4], %s1255
        %s1257 = sand.u32 %s97, 1
        %s1258 = smul.addr %s1257, 8
        %s1259 = scalar_lea.vmem [#allocation8], %s1258
        // Predicated region
        $region45: #{tpu_custom_call.1} parent=31 // pred_check
          %p1260 = pneg %p107
        $region46: #{tpu_custom_call.1} parent=31 // pred_check_branch
          %1262 = sbr.rel (%p1260) target = $region48
        $region47: #{tpu_custom_call.1} parent=31 // pred_region
          %s1264 = ssub.s32 128, 128
          %1265 = vsyncadd %s1256, %s1264
          %s1266 = smul.addr %s21, 128
          %s1267 = scalar_lea.hbm %s3, %s1266
          %s1269 = sshll.u32 %s1259, 4
          %s1270 = int_to_ptr.vmem [resolvable:$true] %s1269
          %1272 = dma.vmem_to_hbm [thread:$0]  %s1270, 128, %s1267, %s1256
        $region48: #{tpu_custom_call.1} parent=31 // pred_fallthru
          _
      $region32: #{tpu_custom_call.1} parent=5 // pred_fallthru
        _
      %p1273 = scmp.le.s32.totalorder 2, %s16
      // Predicated region
      $region49: #{tpu_custom_call.1} parent=5 // pred_check
        %p1274 = pneg %p1273
      $region50: #{tpu_custom_call.1} parent=5 // pred_check_branch
        %1276 = sbr.rel (%p1274) target = $region52
      $region51: #{tpu_custom_call.1} parent=5 // pred_region
        %s1277 = ssub.s32 %s16, 2
        // Predicated region
        $region53: #{tpu_custom_call.1} parent=51 // pred_check
          %p1278 = pneg %p113
        $region54: #{tpu_custom_call.1} parent=51 // pred_check_branch
          %1280 = sbr.rel (%p1278) target = $region56
        $region55: #{tpu_custom_call.1} parent=51 // pred_region
          %s1281 = sand.u32 %s98, 1
          %s1282 = scalar_lea.sflag [#allocation4], %s1281
          %s1283 = sand.u32 %s98, 1
          %s1284 = smul.addr %s1283, 8
          %s1285 = scalar_lea.vmem [#allocation8], %s1284
          %1286 = dma.done %s1282, 128
        $region56: #{tpu_custom_call.1} parent=51 // pred_fallthru
          _
      $region52: #{tpu_custom_call.1} parent=5 // pred_fallthru
        _
    $region6: #{tpu_custom_call.1} parent=1 // loop_footer
      %s20 = sadd.s32 1, %s16
    $region7: #{tpu_custom_call.1} parent=1 // loop_footer_branch
      %15 = sbr.rel target = $region3
    $region8: #{tpu_custom_call.1} parent=1 // loop_exit
      _
    %1287 = vsyncpa [#allocation3], 1
    %s1288 = scalar_lea.sflag [#allocation3], 1
    %1289 = vsyncpa %s1288, 1
    %1290 = vsyncpa [#allocation6], 1
    %1291 = vsyncpa [#allocation4], 1
    %s1292 = scalar_lea.sflag [#allocation4], 1
    %1293 = vsyncpa %s1292, 1

</llo_original>
